<compile_context>
chip_gen: v6e
topology: v6e:2x2x1
jax: 0.10.0
libtpu: 0.0.40
codegen_flags: <defaults>
</compile_context>

<pallas_src>
import functools

import jax
import jax.numpy as jnp
from jax.experimental import pallas as pl
from jax.experimental.pallas import tpu as pltpu


_FUSED_MAX_BLOCK_BYTES = 4 << 20   # max per-buffer bytes for the single-pass path
_TARGET_BLOCK_BYTES = 2 << 20      # per-buffer target for tile sizing
_TARGET_GRID_STEPS = 8             # >= 2 steps per TensorCore on v7x, pipelined


def _cdiv(a, b):
    return -(-a // b)


def _round_up(a, b):
    return (a + b - 1) // b * b


def _vmem_limit(working_bytes):
    # Working set + ~12 MiB Mosaic headroom; never below the 32 MiB scoped
    # default, capped well inside v7x's 64 MiB per-TC VMEM.
    return int(min(max(32 << 20, working_bytes + (12 << 20)), 56 << 20))


def _choose_row_tile(R, S):
    """Row tile for the fused path: ~2 MiB blocks, >= ~8 grid steps when possible."""
    if R <= 8:
        return R                                   # full dim (constraint-exempt)
    row_bytes = S * 4
    tr_bytes = max(8, (_TARGET_BLOCK_BYTES // max(row_bytes, 1)) // 8 * 8)
    tr_steps = max(8, _round_up(_cdiv(R, _TARGET_GRID_STEPS), 8))
    tr = max(8, min(tr_bytes, tr_steps))
    return min(tr, _round_up(R, 8))


# ---------------------------------------------------------------------------
# Fused single-pass kernel: per-row stats + elementwise apply in one tile.
# ---------------------------------------------------------------------------
def _fused_kernel(x_ref, noise_ref, o_ref, *, inv_upper, inv_lower, std_mode,
                  spatial):
    x = x_ref[...]          # (TR, S) f32
    noise = noise_ref[...]  # (TR, S) f32

    ch_max = jnp.max(x, axis=-1, keepdims=True)

    if std_mode == "fixed":
        channel_noise = noise
    else:  # dynamic
        if spatial > 1:
            s = jnp.sum(x, axis=-1, keepdims=True)
            ssq = jnp.sum(x * x, axis=-1, keepdims=True)
            mean = s * (1.0 / spatial)
            # Unbiased (Bessel) variance via sum / sum-of-squares, single sweep.
            var = jnp.maximum(ssq - s * mean, 0.0) * (1.0 / (spatial - 1))
            ch_std = jnp.sqrt(var)
        else:
            # torch.std over a single spatial element is NaN; match it.
            ch_std = jnp.full_like(ch_max, jnp.nan)
        channel_noise = noise * ch_std

    # clone[clone < -channel_max / lower] = 0 ; clone[clone > channel_max / upper] = 0
    # (sequential in PyTorch; equivalent to one OR'd mask).
    lo = -ch_max * inv_lower
    hi = ch_max * inv_upper
    clone = jnp.where((x < lo) | (x > hi), 0.0, x)

    o_ref[...] = x + clone * channel_noise


def _fused_path(x2, n2, *, inv_upper, inv_lower, std_mode, spatial):
    R, S = x2.shape
    tr = _choose_row_tile(R, S)
    grid = (_cdiv(R, tr),)

    kernel = functools.partial(_fused_kernel, inv_upper=inv_upper,
                               inv_lower=inv_lower, std_mode=std_mode,
                               spatial=spatial)
    working = 3 * 2 * tr * S * 4   # x, noise, out; double-buffered

    return pl.pallas_call(
        kernel,
        out_shape=jax.ShapeDtypeStruct((R, S), x2.dtype),
        grid_spec=pltpu.PrefetchScalarGridSpec(
            num_scalar_prefetch=0,
            grid=grid,
            in_specs=[
                pl.BlockSpec((tr, S), lambda i: (i, 0)),
                pl.BlockSpec((tr, S), lambda i: (i, 0)),
            ],
            out_specs=pl.BlockSpec((tr, S), lambda i: (i, 0)),
        ),
        compiler_params=pltpu.CompilerParams(
            dimension_semantics=("parallel",),
            vmem_limit_bytes=_vmem_limit(working)),
    )(x2, n2)


# ---------------------------------------------------------------------------
# Two-pass path for large spatial sizes: lane-tiled stats pass + apply pass.
# ---------------------------------------------------------------------------
def _stats_kernel(x_ref, max_ref, sum_ref, ssq_ref, *, spatial, ts, mask_lanes):
    j = pl.program_id(1)
    x = x_ref[...]          # (TR, TS) f32

    if mask_lanes:
        lane = jax.lax.broadcasted_iota(jnp.int32, x.shape, dimension=1)
        valid = (j * ts + lane) < spatial
        x_for_max = jnp.where(valid, x, -jnp.inf)
        x_for_sum = jnp.where(valid, x, 0.0)
    else:
        x_for_max = x
        x_for_sum = x

    t_max = jnp.max(x_for_max, axis=-1, keepdims=True)            # (TR, 1)
    t_sum = jnp.sum(x_for_sum, axis=-1, keepdims=True)
    t_ssq = jnp.sum(x_for_sum * x_for_sum, axis=-1, keepdims=True)

    # Output blocks have the same block index for every j -> resident in VMEM
    # across the "arbitrary" spatial axis; use them as accumulators.
    @pl.when(j == 0)
    def _():
        max_ref[...] = t_max
        sum_ref[...] = t_sum
        ssq_ref[...] = t_ssq

    @pl.when(j > 0)
    def _():
        max_ref[...] = jnp.maximum(max_ref[...], t_max)
        sum_ref[...] = sum_ref[...] + t_sum
        ssq_ref[...] = ssq_ref[...] + t_ssq


def _apply_kernel(x_ref, noise_ref, max_ref, sum_ref, ssq_ref, o_ref, *,
                  inv_upper, inv_lower, std_mode, spatial):
    x = x_ref[...]          # (TR, TS)
    noise = noise_ref[...]  # (TR, TS)
    ch_max = max_ref[...]   # (TR, 1)

    if std_mode == "fixed":
        channel_noise = noise
    else:  # dynamic
        if spatial > 1:
            s = sum_ref[...]
            ssq = ssq_ref[...]
            mean = s * (1.0 / spatial)
            var = jnp.maximum(ssq - s * mean, 0.0) * (1.0 / (spatial - 1))
            ch_std = jnp.sqrt(var)
        else:
            ch_std = jnp.full_like(ch_max, jnp.nan)
        channel_noise = noise * ch_std

    lo = -ch_max * inv_lower
    hi = ch_max * inv_upper
    clone = jnp.where((x < lo) | (x > hi), 0.0, x)

    o_ref[...] = x + clone * channel_noise


def _two_pass_path(x2, n2, *, inv_upper, inv_lower, std_mode, spatial,
                   ts_override=None):
    R, S = x2.shape
    tr = R if R < 8 else 8

    if ts_override is not None:
        ts = int(ts_override)
        if ts < S:
            ts = max(128, _round_up(ts, 128))
    else:
        ts = max(128, (_TARGET_BLOCK_BYTES // (tr * 4)) // 128 * 128)
    if ts >= S:
        ts = S                                   # single full-dim spatial tile
    mask_lanes = (S % ts) != 0
    grid = (_cdiv(R, tr), _cdiv(S, ts))

    stat_shape = jax.ShapeDtypeStruct((R, 1), jnp.float32)
    stat_spec = pl.BlockSpec((tr, 1), lambda i, j: (i, 0))

    # Pass 1: per-row max / sum / sum-of-squares (reduction axis last).
    stats_kernel = functools.partial(_stats_kernel, spatial=spatial, ts=ts,
                                     mask_lanes=mask_lanes)
    ch_max, ch_sum, ch_ssq = pl.pallas_call(
        stats_kernel,
        out_shape=(stat_shape, stat_shape, stat_shape),
        grid_spec=pltpu.PrefetchScalarGridSpec(
            num_scalar_prefetch=0,
            grid=grid,
            in_specs=[pl.BlockSpec((tr, ts), lambda i, j: (i, j))],
            out_specs=(stat_spec, stat_spec, stat_spec),
        ),
        compiler_params=pltpu.CompilerParams(
            dimension_semantics=("parallel", "arbitrary"),
            vmem_limit_bytes=_vmem_limit(2 * tr * ts * 4)),
    )(x2)

    # Pass 2: elementwise apply; both grid axes independent.
    apply_kernel = functools.partial(_apply_kernel, inv_upper=inv_upper,
                                     inv_lower=inv_lower, std_mode=std_mode,
                                     spatial=spatial)
    working = 3 * 2 * tr * ts * 4
    return pl.pallas_call(
        apply_kernel,
        out_shape=jax.ShapeDtypeStruct((R, S), x2.dtype),
        grid_spec=pltpu.PrefetchScalarGridSpec(
            num_scalar_prefetch=0,
            grid=grid,
            in_specs=[
                pl.BlockSpec((tr, ts), lambda i, j: (i, j)),
                pl.BlockSpec((tr, ts), lambda i, j: (i, j)),
                stat_spec, stat_spec, stat_spec,
            ],
            out_specs=pl.BlockSpec((tr, ts), lambda i, j: (i, j)),
        ),
        compiler_params=pltpu.CompilerParams(
            dimension_semantics=("parallel", "parallel"),
            vmem_limit_bytes=_vmem_limit(working)),
    )(x2, n2, ch_max, ch_sum, ch_ssq)


# ---------------------------------------------------------------------------
# Public wrapper.
# ---------------------------------------------------------------------------
def generator_noise(x, noise, *, upper_bound, lower_bound, std_mode,
                    _force_two_pass=False, _spatial_tile=None):
    """x, noise: (N, C, H, W) float32. Returns (N, C, H, W)."""
    if std_mode not in ("fixed", "dynamic"):
        raise ValueError(f"unknown std mode: {std_mode}")
    N, C, H, W = x.shape
    R, S = N * C, H * W
    x2 = x.reshape(R, S)      # free view of contiguous NCHW
    n2 = noise.reshape(R, S)

    inv_upper = 1.0 / float(upper_bound)
    inv_lower = 1.0 / float(lower_bound)

    # Single fused pass if the minimum viable row tile stays within ~4 MiB per
    # pipeline buffer; otherwise the lane-tiled two-pass path.
    min_tr = R if R < 8 else 8
    fused_ok = (not _force_two_pass) and (min_tr * S * 4 <= _FUSED_MAX_BLOCK_BYTES)

    if fused_ok:
        out2 = _fused_path(x2, n2, inv_upper=inv_upper, inv_lower=inv_lower,
                           std_mode=std_mode, spatial=S)
    else:
        out2 = _two_pass_path(x2, n2, inv_upper=inv_upper, inv_lower=inv_lower,
                              std_mode=std_mode, spatial=S,
                              ts_override=_spatial_tile)
    return out2.reshape(N, C, H, W)


# ---------------------------------------------------------------------------
# Plain-JAX reference mirroring the PyTorch forward.
# ---------------------------------------------------------------------------
def _reference(x, noise, *, upper_bound, lower_bound, std_mode):
    ch_max = jnp.max(x, axis=(2, 3), keepdims=True)
    if std_mode == "dynamic":
        ch_mean = jnp.mean(x, axis=(2, 3), keepdims=True)
        S = x.shape[2] * x.shape[3]
        ch_std = jnp.sqrt(
            jnp.sum((x - ch_mean) ** 2, axis=(2, 3), keepdims=True) / (S - 1))
        channel_noise = noise * ch_std
    else:
        channel_noise = noise
    clone = jnp.where(x < -ch_max / lower_bound, 0.0, x)
    clone = jnp.where(clone > ch_max / upper_bound, 0.0, clone)
    return x + clone * channel_noise


if __name__ == "__main__":
    # GeneratorNoise(__init__) holds only scalars: upper_bound, lower_bound, std.
    upper_bound = 2.0
    lower_bound = 2.0

    keys = jax.random.split(jax.random.PRNGKey(0), 6)

    # Case 1: aligned shape, dynamic std (fused single-pass path).
    # The PyTorch module draws noise ~ N(0,1) inside forward; here it is drawn
    # deterministically in JAX and fed to the kernel.
    x1 = jax.random.normal(keys[0], (2, 4, 16, 16), dtype=jnp.float32)
    n1 = jax.random.normal(keys[1], (2, 4, 16, 16), dtype=jnp.float32)
    out1 = jax.block_until_ready(
        generator_noise(x1, n1, upper_bound=upper_bound,
                        lower_bound=lower_bound, std_mode="dynamic"))
    ref1 = _reference(x1, n1, upper_bound=upper_bound,
                      lower_bound=lower_bound, std_mode="dynamic")
    assert out1.shape == x1.shape
    assert jnp.allclose(out1, ref1, atol=1e-5, rtol=1e-5)

    # Case 2: fixed std on the same shape.
    out2 = jax.block_until_ready(
        generator_noise(x1, n1, upper_bound=upper_bound,
                        lower_bound=lower_bound, std_mode="fixed"))
    ref2 = _reference(x1, n1, upper_bound=upper_bound,
                      lower_bound=lower_bound, std_mode="fixed")
    assert jnp.allclose(out2, ref2, atol=1e-5, rtol=1e-5)

    # Case 3: unaligned shape (6 rows, 100 lanes) — exercises the no-pad
    # partial-block path (rows not a multiple of 8, lanes not a multiple of 128).
    x3 = jax.random.normal(keys[2], (2, 3, 10, 10), dtype=jnp.float32)
    n3 = jax.random.normal(keys[3], (2, 3, 10, 10), dtype=jnp.float32)
    out3 = jax.block_until_ready(
        generator_noise(x3, n3, upper_bound=upper_bound,
                        lower_bound=lower_bound, std_mode="dynamic"))
    ref3 = _reference(x3, n3, upper_bound=upper_bound,
                      lower_bound=lower_bound, std_mode="dynamic")
    assert out3.shape == x3.shape
    assert jnp.allclose(out3, ref3, atol=1e-5, rtol=1e-5)

    # Case 4: large-spatial two-pass path forced at a small shape with a 128-lane
    # spatial tile so the partial last tile (320 % 128 = 64) exercises the stats
    # pass's in-kernel lane masking.
    x4 = jax.random.normal(keys[4], (2, 4, 16, 20), dtype=jnp.float32)
    n4 = jax.random.normal(keys[5], (2, 4, 16, 20), dtype=jnp.float32)
    out4 = jax.block_until_ready(
        generator_noise(x4, n4, upper_bound=upper_bound,
                        lower_bound=lower_bound, std_mode="dynamic",
                        _force_two_pass=True, _spatial_tile=128))
    ref4 = _reference(x4, n4, upper_bound=upper_bound,
                      lower_bound=lower_bound, std_mode="dynamic")
    assert jnp.allclose(out4, ref4, atol=1e-5, rtol=1e-5)

    # Case 4b: two-pass path, fixed std.
    out4b = jax.block_until_ready(
        generator_noise(x4, n4, upper_bound=upper_bound,
                        lower_bound=lower_bound, std_mode="fixed",
                        _force_two_pass=True, _spatial_tile=128))
    ref4b = _reference(x4, n4, upper_bound=upper_bound,
                       lower_bound=lower_bound, std_mode="fixed")
    assert jnp.allclose(out4b, ref4b, atol=1e-5, rtol=1e-5)

    print("KERNEL_OK")
</pallas_src>

<mosaic_0001>
module attributes {stable_mosaic.version = 11 : i64} {
  func.func @_fused_kernel(%arg0: i32, %arg1: memref<8x256xf32, #tpu.memory_space<vmem>>, %arg2: memref<8x256xf32, #tpu.memory_space<vmem>>, %arg3: memref<8x256xf32, #tpu.memory_space<vmem>>) attributes {dimension_semantics = [#tpu.dimension_semantics<parallel>], iteration_bounds = array<i64: 1>, scalar_prefetch = 0 : i64, scratch_operands = 0 : i64, tpu.core_type = #tpu.core_type<tc>, window_params = [{transform_indices = @transform_0, window_bounds = array<i64: 8, 256>}, {transform_indices = @transform_1, window_bounds = array<i64: 8, 256>}, {transform_indices = @transform_2, window_bounds = array<i64: 8, 256>}]} {
    %c0 = arith.constant 0 : index
    %c0_0 = arith.constant 0 : index
    %0 = vector.load %arg1[%c0, %c0_0] : memref<8x256xf32, #tpu.memory_space<vmem>>, vector<8x256xf32>
    %c0_1 = arith.constant 0 : index
    %c0_2 = arith.constant 0 : index
    %1 = vector.load %arg2[%c0_1, %c0_2] : memref<8x256xf32, #tpu.memory_space<vmem>>, vector<8x256xf32>
    %cst = arith.constant dense<0xFF800000> : vector<8xf32>
    %2 = vector.multi_reduction <maximumf>, %0, %cst [1] : vector<8x256xf32> to vector<8xf32>
    %3 = vector.shape_cast %2 : vector<8xf32> to vector<8x1xf32>
    %cst_3 = arith.constant dense<0.000000e+00> : vector<8xf32>
    %4 = vector.multi_reduction <add>, %0, %cst_3 [1] : vector<8x256xf32> to vector<8xf32>
    %5 = vector.shape_cast %4 : vector<8xf32> to vector<8x1xf32>
    %6 = arith.mulf %0, %0 : vector<8x256xf32>
    %cst_4 = arith.constant dense<0.000000e+00> : vector<8xf32>
    %7 = vector.multi_reduction <add>, %6, %cst_4 [1] : vector<8x256xf32> to vector<8xf32>
    %8 = vector.shape_cast %7 : vector<8xf32> to vector<8x1xf32>
    %cst_5 = arith.constant 3.906250e-03 : f32
    %9 = vector.broadcast %cst_5 : f32 to vector<8x1xf32>
    %10 = arith.mulf %5, %9 : vector<8x1xf32>
    %11 = arith.mulf %5, %10 : vector<8x1xf32>
    %12 = arith.subf %8, %11 : vector<8x1xf32>
    %cst_6 = arith.constant 0.000000e+00 : f32
    %13 = vector.broadcast %cst_6 : f32 to vector<8x1xf32>
    %14 = arith.maximumf %12, %13 : vector<8x1xf32>
    %cst_7 = arith.constant 0.00392156886 : f32
    %15 = vector.broadcast %cst_7 : f32 to vector<8x1xf32>
    %16 = arith.mulf %14, %15 : vector<8x1xf32>
    %17 = math.sqrt %16 : vector<8x1xf32>
    %18 = vector.broadcast %17 : vector<8x1xf32> to vector<8x256xf32>
    %19 = arith.mulf %1, %18 : vector<8x256xf32>
    %cst_8 = arith.constant 0.000000e+00 : f32
    %20 = vector.broadcast %cst_8 : f32 to vector<8x1xf32>
    %21 = arith.subf %20, %3 : vector<8x1xf32>
    %cst_9 = arith.constant 5.000000e-01 : f32
    %22 = vector.broadcast %cst_9 : f32 to vector<8x1xf32>
    %23 = arith.mulf %21, %22 : vector<8x1xf32>
    %cst_10 = arith.constant 5.000000e-01 : f32
    %24 = vector.broadcast %cst_10 : f32 to vector<8x1xf32>
    %25 = arith.mulf %3, %24 : vector<8x1xf32>
    %26 = vector.broadcast %23 : vector<8x1xf32> to vector<8x256xf32>
    %27 = arith.cmpf olt, %0, %26 : vector<8x256xf32>
    %28 = vector.broadcast %25 : vector<8x1xf32> to vector<8x256xf32>
    %29 = arith.cmpf ogt, %0, %28 : vector<8x256xf32>
    %30 = arith.ori %27, %29 : vector<8x256xi1>
    %cst_11 = arith.constant 0.000000e+00 : f32
    %31 = vector.broadcast %cst_11 : f32 to vector<8x256xf32>
    %32 = arith.select %30, %31, %0 : vector<8x256xi1>, vector<8x256xf32>
    %33 = arith.mulf %32, %19 : vector<8x256xf32>
    %34 = arith.addf %0, %33 : vector<8x256xf32>
    %c0_12 = arith.constant 0 : index
    %c0_13 = arith.constant 0 : index
    %35 = vector.load %arg3[%c0_12, %c0_13] : memref<8x256xf32, #tpu.memory_space<vmem>>, vector<8x256xf32>
    tpu.vector_store %arg3[%c0_12, %c0_13], %34 {strides = array<i32>} : memref<8x256xf32, #tpu.memory_space<vmem>>, vector<8x256xf32>,
    return
  }
  func.func @transform_0(%arg0: i32) -> (i32, i32) {
    %c0_i32 = arith.constant 0 : i32
    %c0_i32_0 = arith.constant 0 : i32
    return %arg0, %c0_i32 : i32, i32
  }
  func.func @transform_1(%arg0: i32) -> (i32, i32) {
    %c0_i32 = arith.constant 0 : i32
    %c0_i32_0 = arith.constant 0 : i32
    return %arg0, %c0_i32 : i32, i32
  }
  func.func @transform_2(%arg0: i32) -> (i32, i32) {
    %c0_i32 = arith.constant 0 : i32
    %c0_i32_0 = arith.constant 0 : i32
    return %arg0, %c0_i32 : i32, i32
  }
}

</mosaic_0001>

<llo_original>
// kernel: tpu_custom_call.1
$region0: #{tpu_custom_call.1}
  #allocation0 [shape = 'u32[]', space=smem, size = 0x4, offset = 0x4, fixed_abs, tag = 'smem constant byte address 0x4 - core index']
  #allocation1 [shape = 'u32[144,128]{1,0:T(1,128)}', space=vmem, size = 0x12000, scoped, tag = 'internal scratch']
  %s0 = inlined_call_operand.hbm [shape: f32[8,256], index: 0, kind: input, shape index: {}]
  %s1 = inlined_call_operand.hbm [shape: f32[8,256], index: 1, kind: input, shape index: {}]
  %s2 = inlined_call_operand.hbm [shape: f32[8,256], index: 2, kind: output, shape index: {}]
  %s3 = sld [smem:[#allocation0]]
  $region26: #{tpu_custom_call.1} parent=0
    _
  %s5 = ssub.s32 1, %s3
  %s6 = scalar_select 0, %s5, %s3
  $region1: #{tpu_custom_call.1} parent=0
    #allocation2 [shape = 'u8[8192]{0}', space=vmem, size = 0x2000, scoped, tag = 'input window, operand 0, single buffered']
    #allocation3 [shape = 's32[1]{0}', space=sflag, size = 0x4, scoped, tag = 'scoped memory for tpu_custom_call.1']
    #allocation4 [shape = 's32[1]{0}', space=sflag, size = 0x4, scoped, tag = 'scoped memory for tpu_custom_call.1']
    #allocation5 [shape = 'u8[8192]{0}', space=vmem, size = 0x2000, scoped, tag = 'input window, operand 1, single buffered']
    #allocation6 [shape = 's32[1]{0}', space=sflag, size = 0x4, scoped, tag = 'scoped memory for tpu_custom_call.1']
    #allocation7 [shape = 'u8[8192]{0}', space=vmem, size = 0x2000, scoped, tag = 'output window, operand 0, single buffered']
    %7 = vsyncpa [#allocation3], 0
    %8 = vsyncpa [#allocation6], 0
    %9 = vsyncpa [#allocation4], 0
    // Predicated region
    $region2: #{tpu_custom_call.1} parent=1 // pred_check
      _
    $region3: #{tpu_custom_call.1} parent=1 // pred_check_branch
      %11 = sbr.rel (0) target = $region5
    $region4: #{tpu_custom_call.1} parent=1 // pred_region
      %s13 = ssub.s32 256, 256
      %14 = vsyncadd [#allocation3], %s13
      %s16 = sshll.u32 [#allocation2], 4
      %s17 = int_to_ptr.vmem [resolvable:$true] %s16
      %19 = dma.hbm_to_vmem [thread:$0]  %s0, 256, %s17, [#allocation3]
    $region5: #{tpu_custom_call.1} parent=1 // pred_fallthru
      _
    // Predicated region
    $region6: #{tpu_custom_call.1} parent=1 // pred_check
      _
    $region7: #{tpu_custom_call.1} parent=1 // pred_check_branch
      %21 = sbr.rel (0) target = $region9
    $region8: #{tpu_custom_call.1} parent=1 // pred_region
      %s23 = ssub.s32 256, 256
      %24 = vsyncadd [#allocation6], %s23
      %s26 = sshll.u32 [#allocation5], 4
      %s27 = int_to_ptr.vmem [resolvable:$true] %s26
      %29 = dma.hbm_to_vmem [thread:$0]  %s1, 256, %s27, [#allocation6]
    $region9: #{tpu_custom_call.1} parent=1 // pred_fallthru
      _
    // Predicated region
    $region10: #{tpu_custom_call.1} parent=1 // pred_check
      _
    $region11: #{tpu_custom_call.1} parent=1 // pred_check_branch
      %31 = sbr.rel (0) target = $region13
    $region12: #{tpu_custom_call.1} parent=1 // pred_region
      %32 = dma.done [#allocation3], 256
    $region13: #{tpu_custom_call.1} parent=1 // pred_fallthru
      _
    // Predicated region
    $region14: #{tpu_custom_call.1} parent=1 // pred_check
      _
    $region15: #{tpu_custom_call.1} parent=1 // pred_check_branch
      %34 = sbr.rel (0) target = $region17
    $region16: #{tpu_custom_call.1} parent=1 // pred_region
      %35 = dma.done [#allocation6], 256
    $region17: #{tpu_custom_call.1} parent=1 // pred_fallthru
      _
    %v36 = vld [vmem:[#allocation2] sm:$0xff]
    %v37 = vld [vmem:[#allocation2 + $0x8] sm:$0xff]
    %v38 = vld [vmem:[#allocation5] sm:$0xff]
    %v39 = vld [vmem:[#allocation5 + $0x8] sm:$0xff]
    %v40 = vmax.f32 %v36, %v37
    %41 = vmax.xlane.f32.xlu0 %v40
    %v42 = vpop.xlane.xlu0 %41
    %v43 = vadd.f32 %v36, %v37
    %44 = vadd.xlane.f32.xlu0 %v43
    %v45 = vpop.xlane.xlu0 %44
    %v46 = vmul.f32 %v36, %v36
    %v47 = vmul.f32 %v37, %v37
    %v48 = vadd.f32 %v46, %v47
    %49 = vadd.xlane.f32.xlu0 %v48
    %v50 = vpop.xlane.xlu0 %49
    %v51 = vmul.f32 %v45, 0.00390625
    %v52 = vmul.f32 %v45, %v51
    %v53 = vsub.f32 %v50, %v52
    %v54 = vmax.f32 %v53, 0.0
    %v55 = vmul.f32 %v54, 0.003921569
    %v56 = vrsqrt.pop %v55
    %v57 = vmul.f32 %v55, %v56
    %vm58 = vcmp.eq.f32.partialorder %v55, inf
    %v59 = vsel %vm58, %v55, %v57
    %vm60 = vcmp.eq.f32.partialorder %v55, 0.0
    %v61 = vand.u32 %v55, 2147483648
    %v62 = vsel %vm60, %v61, %v59
    %v63 = vmul.f32 %v38, %v62
    %v64 = vmul.f32 %v39, %v62
    %v65 = vsub.f32 0.0, %v42
    %v66 = vmul.f32 %v65, 0.5
    %v67 = vmul.f32 %v42, 0.5
    %vm68 = vcmp.lt.f32.partialorder %v36, %v66
    %vm69 = vcmp.lt.f32.partialorder %v37, %v66
    %vm70 = vcmp.gt.f32.partialorder %v36, %v67
    %vm71 = vcmp.gt.f32.partialorder %v37, %v67
    %vm72 = vmor %vm68, %vm70
    %vm73 = vmor %vm69, %vm71
    %v74 = vsel %vm72, 0.0, %v36
    %v75 = vsel %vm73, 0.0, %v37
    %v76 = vmul.f32 %v74, %v63
    %v77 = vmul.f32 %v75, %v64
    %v78 = vadd.f32 %v36, %v76
    %v79 = vadd.f32 %v37, %v77
    %80 = vst [vmem:[#allocation7] sm:$0xff] %v78
    %81 = vst [vmem:[#allocation7 + $0x8] sm:$0xff] %v79
    // Predicated region
    $region18: #{tpu_custom_call.1} parent=1 // pred_check
      _
    $region19: #{tpu_custom_call.1} parent=1 // pred_check_branch
      %83 = sbr.rel (0) target = $region21
    $region20: #{tpu_custom_call.1} parent=1 // pred_region
      %s85 = ssub.s32 256, 256
      %86 = vsyncadd [#allocation4], %s85
      %s88 = sshll.u32 [#allocation7], 4
      %s89 = int_to_ptr.vmem [resolvable:$true] %s88
      %91 = dma.vmem_to_hbm [thread:$0]  %s89, 256, %s2, [#allocation4]
    $region21: #{tpu_custom_call.1} parent=1 // pred_fallthru
      _
    // Predicated region
    $region22: #{tpu_custom_call.1} parent=1 // pred_check
      _
    $region23: #{tpu_custom_call.1} parent=1 // pred_check_branch
      %93 = sbr.rel (0) target = $region25
    $region24: #{tpu_custom_call.1} parent=1 // pred_region
      %94 = dma.done [#allocation4], 256
    $region25: #{tpu_custom_call.1} parent=1 // pred_fallthru
      _
    %95 = vsyncpa [#allocation3], 1
    %96 = vsyncpa [#allocation6], 1
    %97 = vsyncpa [#allocation4], 1

</llo_original>
